<compile_context>
chip_gen: v7x
topology: tpu7x:2x2x1
jax: 0.10.0
libtpu: 0.0.40
codegen_flags: <defaults>
</compile_context>

<pallas_src>
import functools

import jax
import jax.numpy as jnp
import numpy as np
from jax.experimental import pallas as pl
from jax.experimental.pallas import tpu as pltpu


def _contrastive_kernel(im_ref, caps_ref, loss_ref, meta_ref,
                        colmax_acc, diagrow_acc, *, margin, offset, n_real):
    t = pl.program_id(0)
    nt = pl.num_programs(0)
    tm = im_ref.shape[0]          # rows in this im tile
    bp = caps_ref.shape[0]        # (possibly padded) batch size
    padded = bp != n_real
    neg_inf = jnp.float32(-jnp.inf)
    marg = jnp.float32(margin)

    @pl.when(t == 0)
    def _init():
        loss_ref[...] = jnp.zeros_like(loss_ref)
        colmax_acc[...] = jnp.full_like(colmax_acc, -jnp.inf)
        diagrow_acc[...] = jnp.zeros_like(diagrow_acc)

    im = im_ref[...]
    caps = caps_ref[...]

    # scores[r, j] = <im_tile[r], caps[j]>; contract last dims of both operands
    # so the MXU handles the transposed-rhs form natively (no caps relayout).
    scores = jax.lax.dot_general(
        im, caps,
        dimension_numbers=(((1,), (1,)), ((), ())),
        preferred_element_type=jnp.float32)                      # (tm, bp) f32

    row_start = t * tm
    grow = row_start + jax.lax.broadcasted_iota(jnp.int32, (tm, 1), 0)
    col = jax.lax.broadcasted_iota(jnp.int32, (tm, bp), 1)
    diag_mask = col == grow

    # Exact diagonal taken from the MXU scores (needed bit-exact for ranks).
    # One masked product, reused for both orientations.
    diag_sel = jnp.where(diag_mask, scores, 0.0)
    diag_col = jnp.sum(diag_sel, axis=1, keepdims=True)          # (tm, 1)
    diagrow_acc[...] += jnp.sum(diag_sel, axis=0, keepdims=True)  # (1, bp)

    # Scores with pad columns removed (ranks/top1) and with the diagonal
    # additionally removed (hardest-negative maxima).
    s_rank = jnp.where(col < n_real, scores, neg_inf) if padded else scores
    s_off = jnp.where(diag_mask, neg_inf, s_rank)

    # --- caption retrieval direction: per-row hardest negative, fused relu∘max
    row_max_off = jnp.max(s_off, axis=1, keepdims=True)          # (tm, 1)
    row_loss = jnp.maximum(marg + row_max_off - diag_col, 0.0)
    if padded:
        row_loss = jnp.where(grow < n_real, row_loss, 0.0)
    loss_ref[...] += jnp.sum(row_loss, keepdims=True)

    # --- image retrieval direction: accumulate per-column off-diagonal max
    s_col = jnp.where(grow < n_real, s_off, neg_inf) if padded else s_off
    colmax_acc[...] = jnp.maximum(colmax_acc[...],
                                  jnp.max(s_col, axis=0, keepdims=True))

    # --- ranks / top1 (tie-break matches np.flip(np.argsort(scores), 1)) ---
    target_col = grow + offset
    if offset == 0:
        target = diag_col                                        # exact
    else:
        # TODO(synk): the reference raises IndexError when i + offset >= B;
        # such rows have no target here and rank against 0.0.
        target = jnp.sum(jnp.where(col == target_col, scores, 0.0),
                         axis=1, keepdims=True)

    gt = (s_rank > target).astype(jnp.float32)
    eq_after = jnp.logical_and(s_rank == target,
                               col > target_col).astype(jnp.float32)
    ranks_col = jnp.sum(gt + eq_after, axis=1, keepdims=True)    # (tm, 1)

    col_f = col.astype(jnp.float32)
    row_max = jnp.max(s_rank, axis=1, keepdims=True)
    top1_col = jnp.max(jnp.where(s_rank == row_max, col_f, -1.0),
                       axis=1, keepdims=True)                    # (tm, 1)

    # Relayout (tm,1) -> (1,tm) via a masked cross-sublane reduction so the
    # int32 outputs are stored lane-dense (unmasked vst) instead of
    # lane-width-1 masked stores.
    rloc = jax.lax.broadcasted_iota(jnp.int32, (tm, tm), 0)
    cloc = jax.lax.broadcasted_iota(jnp.int32, (tm, tm), 1)
    eye = rloc == cloc
    ranks_row = jnp.sum(jnp.where(eye, ranks_col, 0.0), axis=0, keepdims=True)
    top1_row = jnp.sum(jnp.where(eye, top1_col, 0.0), axis=0, keepdims=True)
    meta_ref[0:1, :] = ranks_row.astype(jnp.int32)
    meta_ref[1:2, :] = top1_row.astype(jnp.int32)

    # --- finalize the image direction on the last row tile ---
    @pl.when(t == nt - 1)
    def _finalize():
        col_loss = jnp.maximum(marg + colmax_acc[...] - diagrow_acc[...], 0.0)
        loss_ref[...] += jnp.sum(col_loss, keepdims=True)


def contrastive_loss(im, caps, margin=0.0, offset=0, *,
                     block_rows=256, bf16_matmul=False):
    """Returns (loss, ranks, top1) matching ContrastiveLoss.forward."""
    B, D = im.shape
    assert caps.shape == (B, D)

    if bf16_matmul:
        # v6e/v7x: bf16 MXU inputs, f32 accumulation.  Integer outputs then
        # follow the bf16 scores (internally consistent, not f32-exact).
        im = im.astype(jnp.bfloat16)
        caps = caps.astype(jnp.bfloat16)

    # Row tiling: single resident tile for small batches; otherwise 128-aligned
    # tiles with zero-padded rows that are masked inside the kernel.
    if B <= block_rows:
        tm, Bp = B, B
    else:
        tm = max(128, (block_rows // 128) * 128)
        Bp = pl.cdiv(B, tm) * tm
        if Bp != B:
            pad = Bp - B
            im = jnp.pad(im, ((0, pad), (0, 0)))
            caps = jnp.pad(caps, ((0, pad), (0, 0)))
    nt = Bp // tm

    kernel = functools.partial(_contrastive_kernel,
                               margin=float(margin),
                               offset=int(offset),
                               n_real=B)

    # Rough VMEM budget (double-buffered inputs + score tile + accumulators);
    # only override the default scoped limit when it is actually needed.
    esz = 2 if bf16_matmul else 4
    vmem_est = 2 * (tm * D + Bp * D) * esz + 3 * tm * Bp * 4 + 2 * Bp * 4
    vmem_limit = None
    if vmem_est > 24 * 1024 * 1024:
        vmem_limit = min(int(vmem_est * 3 // 2), 100 * 1024 * 1024)

    loss, meta = pl.pallas_call(
        kernel,
        out_shape=(
            jax.ShapeDtypeStruct((1, 1), jnp.float32),   # loss (accumulated)
            jax.ShapeDtypeStruct((2, Bp), jnp.int32),    # [ranks; top1], lane-dense
        ),
        grid_spec=pltpu.PrefetchScalarGridSpec(
            num_scalar_prefetch=0,
            grid=(nt,),
            in_specs=[
                pl.BlockSpec((tm, D), lambda t: (t, 0)),   # im row tile
                pl.BlockSpec((Bp, D), lambda t: (0, 0)),   # caps, resident
            ],
            out_specs=[
                pl.BlockSpec((1, 1), lambda t: (0, 0)),    # loss accumulator
                pl.BlockSpec((2, tm), lambda t: (0, t)),   # ranks/top1 tile
            ],
            scratch_shapes=[
                pltpu.VMEM((1, Bp), jnp.float32),  # running per-column off-diag max
                pltpu.VMEM((1, Bp), jnp.float32),  # diagonal, row orientation
            ],
        ),
        compiler_params=pltpu.CompilerParams(
            dimension_semantics=("arbitrary",),
            vmem_limit_bytes=vmem_limit,
        ),
    )(im, caps)

    return loss[0, 0], meta[0, :B], meta[1, :B]


def _reference(im, caps, margin=0.0, offset=0):
    """Pure-numpy reimplementation of the PyTorch forward (for verification)."""
    im = np.asarray(im, np.float32)
    caps = np.asarray(caps, np.float32)
    scores = im @ caps.T
    B = im.shape[0]
    diag = np.diag(scores).reshape(B, 1)
    cost_cap = np.clip(margin + scores - diag, 0.0, None)
    cost_im = np.clip(margin + scores - diag.T, 0.0, None)
    eye = np.eye(B, dtype=bool)
    cost_cap[eye] = 0.0
    cost_im[eye] = 0.0
    sorted_ranks = np.flip(np.argsort(scores, axis=1), 1)
    top1 = sorted_ranks[:, 0]
    ranks = [int(np.where(sorted_ranks[i, :] == i + offset)[0][0])
             for i in range(B)]
    loss = cost_cap.max(1).sum() + cost_im.max(0).sum()
    return np.float32(loss), np.array(ranks, np.int32), top1.astype(np.int32)


if __name__ == "__main__":
    B, D = 8, 32  # batch of 8 image/caption pairs, embedding dim 32
    key = jax.random.PRNGKey(0)
    k_im, k_cap = jax.random.split(key)
    im = jax.random.normal(k_im, (B, D), dtype=jnp.float32)
    caps = jax.random.normal(k_cap, (B, D), dtype=jnp.float32)

    for margin in (0.0, 0.2):
        loss, ranks, top1 = contrastive_loss(im, caps, margin=margin, offset=0)
        jax.block_until_ready((loss, ranks, top1))

        ref_loss, ref_ranks, ref_top1 = _reference(im, caps,
                                                   margin=margin, offset=0)
        np.testing.assert_allclose(np.asarray(loss), ref_loss,
                                   rtol=1e-4, atol=1e-5)
        np.testing.assert_array_equal(np.asarray(ranks), ref_ranks)
        np.testing.assert_array_equal(np.asarray(top1), ref_top1)

    print("KERNEL_OK")
</pallas_src>

<mosaic_0001>
module attributes {stable_mosaic.version = 11 : i64} {
  func.func @_contrastive_kernel(%arg0: i32, %arg1: memref<8x32xf32, #tpu.memory_space<vmem>>, %arg2: memref<8x32xf32, #tpu.memory_space<vmem>>, %arg3: memref<1x1xf32, #tpu.memory_space<vmem>>, %arg4: memref<2x8xi32, #tpu.memory_space<vmem>>, %arg5: memref<1x8xf32, #tpu.memory_space<vmem>>, %arg6: memref<1x8xf32, #tpu.memory_space<vmem>>) attributes {dimension_semantics = [#tpu.dimension_semantics<arbitrary>], iteration_bounds = array<i64: 1>, scalar_prefetch = 0 : i64, scratch_operands = 2 : i64, tpu.core_type = #tpu.core_type<tc>, window_params = [{transform_indices = @transform_0, window_bounds = array<i64: 8, 32>}, {pipeline_mode = #tpu.pipeline_mode<synchronous>, transform_indices = @transform_1, window_bounds = array<i64: 8, 32>}, {pipeline_mode = #tpu.pipeline_mode<synchronous>, transform_indices = @transform_2, window_bounds = array<i64: 1, 1>}, {transform_indices = @transform_3, window_bounds = array<i64: 2, 8>}]} {
    %c0_i32 = arith.constant 0 : i32
    %0 = arith.cmpi eq, %arg0, %c0_i32 : i32
    %1 = arith.extui %0 : i1 to i32
    %c0_i32_0 = arith.constant 0 : i32
    %2 = arith.cmpi ne, %1, %c0_i32_0 : i32
    scf.if %2 {
      %cst_40 = arith.constant 0.000000e+00 : f32
      %91 = vector.broadcast %cst_40 : f32 to vector<1x1xf32>
      %c0_41 = arith.constant 0 : index
      %c0_42 = arith.constant 0 : index
      %92 = vector.load %arg3[%c0_41, %c0_42] : memref<1x1xf32, #tpu.memory_space<vmem>>, vector<1x1xf32>
      tpu.vector_store %arg3[%c0_41, %c0_42], %91 {strides = array<i32>} : memref<1x1xf32, #tpu.memory_space<vmem>>, vector<1x1xf32>,
      %cst_43 = arith.constant 0xFF800000 : f32
      %93 = vector.broadcast %cst_43 : f32 to vector<1x8xf32>
      %c0_44 = arith.constant 0 : index
      %c0_45 = arith.constant 0 : index
      %94 = vector.load %arg5[%c0_44, %c0_45] : memref<1x8xf32, #tpu.memory_space<vmem>>, vector<1x8xf32>
      tpu.vector_store %arg5[%c0_44, %c0_45], %93 {strides = array<i32>} : memref<1x8xf32, #tpu.memory_space<vmem>>, vector<1x8xf32>,
      %cst_46 = arith.constant 0.000000e+00 : f32
      %95 = vector.broadcast %cst_46 : f32 to vector<1x8xf32>
      %c0_47 = arith.constant 0 : index
      %c0_48 = arith.constant 0 : index
      %96 = vector.load %arg6[%c0_47, %c0_48] : memref<1x8xf32, #tpu.memory_space<vmem>>, vector<1x8xf32>
      tpu.vector_store %arg6[%c0_47, %c0_48], %95 {strides = array<i32>} : memref<1x8xf32, #tpu.memory_space<vmem>>, vector<1x8xf32>,
    } else {
    }
    %c0 = arith.constant 0 : index
    %c0_1 = arith.constant 0 : index
    %3 = vector.load %arg1[%c0, %c0_1] : memref<8x32xf32, #tpu.memory_space<vmem>>, vector<8x32xf32>
    %c0_2 = arith.constant 0 : index
    %c0_3 = arith.constant 0 : index
    %4 = vector.load %arg2[%c0_2, %c0_3] : memref<8x32xf32, #tpu.memory_space<vmem>>, vector<8x32xf32>
    %cst = arith.constant dense<0.000000e+00> : vector<8x8xf32>
    %5 = tpu.matmul %3, %4, %cst {dimension_numbers = #tpu.dot_dimension_numbers<[1], [1], [0], [0], [0, 0, 1, 0], [], []>} : vector<8x32xf32>, vector<8x32xf32>, vector<8x8xf32> -> vector<8x8xf32>
    %c8_i32 = arith.constant 8 : i32
    %6 = arith.muli %arg0, %c8_i32 : i32
    %7 = tpu.iota {dimensions = array<i32: 0>} : vector<8x1xi32>
    %8 = vector.broadcast %6 : i32 to vector<8x1xi32>
    %9 = arith.addi %8, %7 : vector<8x1xi32>
    %10 = tpu.iota {dimensions = array<i32: 1>} : vector<8x8xi32>
    %11 = vector.broadcast %9 : vector<8x1xi32> to vector<8x8xi32>
    %12 = arith.cmpi eq, %10, %11 : vector<8x8xi32>
    %cst_4 = arith.constant 0.000000e+00 : f32
    %13 = vector.broadcast %cst_4 : f32 to vector<8x8xf32>
    %14 = arith.select %12, %5, %13 : vector<8x8xi1>, vector<8x8xf32>
    %cst_5 = arith.constant dense<0.000000e+00> : vector<8xf32>
    %15 = vector.multi_reduction <add>, %14, %cst_5 [1] : vector<8x8xf32> to vector<8xf32>
    %16 = vector.shape_cast %15 : vector<8xf32> to vector<8x1xf32>
    %c0_6 = arith.constant 0 : index
    %c0_7 = arith.constant 0 : index
    %17 = vector.load %arg6[%c0_6, %c0_7] : memref<1x8xf32, #tpu.memory_space<vmem>>, vector<1x8xf32>
    %cst_8 = arith.constant dense<0.000000e+00> : vector<8xf32>
    %18 = vector.multi_reduction <add>, %14, %cst_8 [0] : vector<8x8xf32> to vector<8xf32>
    %19 = vector.shape_cast %18 : vector<8xf32> to vector<1x8xf32>
    %20 = arith.addf %17, %19 : vector<1x8xf32>
    %c0_9 = arith.constant 0 : index
    %c0_10 = arith.constant 0 : index
    %21 = vector.load %arg6[%c0_9, %c0_10] : memref<1x8xf32, #tpu.memory_space<vmem>>, vector<1x8xf32>
    tpu.vector_store %arg6[%c0_9, %c0_10], %20 {strides = array<i32>} : memref<1x8xf32, #tpu.memory_space<vmem>>, vector<1x8xf32>,
    %cst_11 = arith.constant 0xFF800000 : f32
    %22 = vector.broadcast %cst_11 : f32 to vector<8x8xf32>
    %23 = arith.select %12, %22, %5 : vector<8x8xi1>, vector<8x8xf32>
    %cst_12 = arith.constant dense<0xFF800000> : vector<8xf32>
    %24 = vector.multi_reduction <maximumf>, %23, %cst_12 [1] : vector<8x8xf32> to vector<8xf32>
    %25 = vector.shape_cast %24 : vector<8xf32> to vector<8x1xf32>
    %cst_13 = arith.constant 0.000000e+00 : f32
    %26 = vector.broadcast %cst_13 : f32 to vector<8x1xf32>
    %27 = arith.addf %26, %25 : vector<8x1xf32>
    %28 = arith.subf %27, %16 : vector<8x1xf32>
    %cst_14 = arith.constant 0.000000e+00 : f32
    %29 = vector.broadcast %cst_14 : f32 to vector<8x1xf32>
    %30 = arith.maximumf %28, %29 : vector<8x1xf32>
    %c0_15 = arith.constant 0 : index
    %c0_16 = arith.constant 0 : index
    %31 = vector.load %arg3[%c0_15, %c0_16] : memref<1x1xf32, #tpu.memory_space<vmem>>, vector<1x1xf32>
    %32 = vector.shape_cast %30 : vector<8x1xf32> to vector<1x8x1xf32>
    %cst_17 = arith.constant dense<0.000000e+00> : vector<1xf32>
    %33 = vector.multi_reduction <add>, %32, %cst_17 [1, 2] : vector<1x8x1xf32> to vector<1xf32>
    %34 = vector.shape_cast %33 : vector<1xf32> to vector<1x1x1xf32>
    %35 = vector.extract %34[0, 0, 0] : f32 from vector<1x1x1xf32>
    %36 = vector.broadcast %35 : f32 to vector<1x1xf32>
    %37 = arith.addf %31, %36 : vector<1x1xf32>
    %c0_18 = arith.constant 0 : index
    %c0_19 = arith.constant 0 : index
    %38 = vector.load %arg3[%c0_18, %c0_19] : memref<1x1xf32, #tpu.memory_space<vmem>>, vector<1x1xf32>
    tpu.vector_store %arg3[%c0_18, %c0_19], %37 {strides = array<i32>} : memref<1x1xf32, #tpu.memory_space<vmem>>, vector<1x1xf32>,
    %c0_20 = arith.constant 0 : index
    %c0_21 = arith.constant 0 : index
    %39 = vector.load %arg5[%c0_20, %c0_21] : memref<1x8xf32, #tpu.memory_space<vmem>>, vector<1x8xf32>
    %cst_22 = arith.constant dense<0xFF800000> : vector<8xf32>
    %40 = vector.multi_reduction <maximumf>, %23, %cst_22 [0] : vector<8x8xf32> to vector<8xf32>
    %41 = vector.shape_cast %40 : vector<8xf32> to vector<1x8xf32>
    %42 = arith.maximumf %39, %41 : vector<1x8xf32>
    %c0_23 = arith.constant 0 : index
    %c0_24 = arith.constant 0 : index
    %43 = vector.load %arg5[%c0_23, %c0_24] : memref<1x8xf32, #tpu.memory_space<vmem>>, vector<1x8xf32>
    tpu.vector_store %arg5[%c0_23, %c0_24], %42 {strides = array<i32>} : memref<1x8xf32, #tpu.memory_space<vmem>>, vector<1x8xf32>,
    %c0_i32_25 = arith.constant 0 : i32
    %44 = vector.broadcast %c0_i32_25 : i32 to vector<8x1xi32>
    %45 = arith.addi %9, %44 : vector<8x1xi32>
    %46 = vector.broadcast %16 : vector<8x1xf32> to vector<8x8xf32>
    %47 = arith.cmpf ogt, %5, %46 : vector<8x8xf32>
    %48 = arith.extui %47 : vector<8x8xi1> to vector<8x8xi32>
    %49 = arith.sitofp %48 : vector<8x8xi32> to vector<8x8xf32>
    %50 = vector.broadcast %16 : vector<8x1xf32> to vector<8x8xf32>
    %51 = arith.cmpf oeq, %5, %50 : vector<8x8xf32>
    %52 = vector.broadcast %45 : vector<8x1xi32> to vector<8x8xi32>
    %53 = arith.cmpi sgt, %10, %52 : vector<8x8xi32>
    %54 = arith.andi %51, %53 : vector<8x8xi1>
    %55 = arith.extui %54 : vector<8x8xi1> to vector<8x8xi32>
    %56 = arith.sitofp %55 : vector<8x8xi32> to vector<8x8xf32>
    %57 = arith.addf %49, %56 : vector<8x8xf32>
    %cst_26 = arith.constant dense<0.000000e+00> : vector<8xf32>
    %58 = vector.multi_reduction <add>, %57, %cst_26 [1] : vector<8x8xf32> to vector<8xf32>
    %59 = vector.shape_cast %58 : vector<8xf32> to vector<8x1xf32>
    %60 = arith.sitofp %10 : vector<8x8xi32> to vector<8x8xf32>
    %cst_27 = arith.constant dense<0xFF800000> : vector<8xf32>
    %61 = vector.multi_reduction <maximumf>, %5, %cst_27 [1] : vector<8x8xf32> to vector<8xf32>
    %62 = vector.shape_cast %61 : vector<8xf32> to vector<8x1xf32>
    %63 = vector.broadcast %62 : vector<8x1xf32> to vector<8x8xf32>
    %64 = arith.cmpf oeq, %5, %63 : vector<8x8xf32>
    %cst_28 = arith.constant -1.000000e+00 : f32
    %65 = vector.broadcast %cst_28 : f32 to vector<8x8xf32>
    %66 = arith.select %64, %60, %65 : vector<8x8xi1>, vector<8x8xf32>
    %cst_29 = arith.constant dense<0xFF800000> : vector<8xf32>
    %67 = vector.multi_reduction <maximumf>, %66, %cst_29 [1] : vector<8x8xf32> to vector<8xf32>
    %68 = vector.shape_cast %67 : vector<8xf32> to vector<8x1xf32>
    %69 = tpu.iota {dimensions = array<i32: 0>} : vector<8x8xi32>
    %70 = tpu.iota {dimensions = array<i32: 1>} : vector<8x8xi32>
    %71 = arith.cmpi eq, %69, %70 : vector<8x8xi32>
    %cst_30 = arith.constant 0.000000e+00 : f32
    %72 = vector.shape_cast %59 : vector<8x1xf32> to vector<8x1xf32>
    %73 = vector.broadcast %72 : vector<8x1xf32> to vector<8x8xf32>
    %74 = vector.broadcast %cst_30 : f32 to vector<8x8xf32>
    %75 = arith.select %71, %73, %74 : vector<8x8xi1>, vector<8x8xf32>
    %cst_31 = arith.constant dense<0.000000e+00> : vector<8xf32>
    %76 = vector.multi_reduction <add>, %75, %cst_31 [0] : vector<8x8xf32> to vector<8xf32>
    %77 = vector.shape_cast %76 : vector<8xf32> to vector<1x8xf32>
    %cst_32 = arith.constant 0.000000e+00 : f32
    %78 = vector.shape_cast %68 : vector<8x1xf32> to vector<8x1xf32>
    %79 = vector.broadcast %78 : vector<8x1xf32> to vector<8x8xf32>
    %80 = vector.broadcast %cst_32 : f32 to vector<8x8xf32>
    %81 = arith.select %71, %79, %80 : vector<8x8xi1>, vector<8x8xf32>
    %cst_33 = arith.constant dense<0.000000e+00> : vector<8xf32>
    %82 = vector.multi_reduction <add>, %81, %cst_33 [0] : vector<8x8xf32> to vector<8xf32>
    %83 = vector.shape_cast %82 : vector<8xf32> to vector<1x8xf32>
    %84 = arith.fptosi %77 : vector<1x8xf32> to vector<1x8xi32>
    %c0_34 = arith.constant 0 : index
    %c0_35 = arith.constant 0 : index
    %85 = vector.load %arg4[%c0_34, %c0_35] : memref<2x8xi32, #tpu.memory_space<vmem>>, vector<1x8xi32>
    tpu.vector_store %arg4[%c0_34, %c0_35], %84 {strides = array<i32>} : memref<2x8xi32, #tpu.memory_space<vmem>>, vector<1x8xi32>,
    %86 = arith.fptosi %83 : vector<1x8xf32> to vector<1x8xi32>
    %c1 = arith.constant 1 : index
    %c0_36 = arith.constant 0 : index
    %87 = vector.load %arg4[%c1, %c0_36] : memref<2x8xi32, #tpu.memory_space<vmem>>, vector<1x8xi32>
    tpu.vector_store %arg4[%c1, %c0_36], %86 {strides = array<i32>} : memref<2x8xi32, #tpu.memory_space<vmem>>, vector<1x8xi32>,
    %c0_i32_37 = arith.constant 0 : i32
    %88 = arith.cmpi eq, %arg0, %c0_i32_37 : i32
    %89 = arith.extui %88 : i1 to i32
    %cst_38 = arith.constant 0.000000e+00 : f32
    %c0_i32_39 = arith.constant 0 : i32
    %90 = arith.cmpi ne, %89, %c0_i32_39 : i32
    scf.if %90 {
      %c0_40 = arith.constant 0 : index
      %c0_41 = arith.constant 0 : index
      %91 = vector.load %arg5[%c0_40, %c0_41] : memref<1x8xf32, #tpu.memory_space<vmem>>, vector<1x8xf32>
      %92 = vector.broadcast %cst_38 : f32 to vector<1x8xf32>
      %93 = arith.addf %92, %91 : vector<1x8xf32>
      %c0_42 = arith.constant 0 : index
      %c0_43 = arith.constant 0 : index
      %94 = vector.load %arg6[%c0_42, %c0_43] : memref<1x8xf32, #tpu.memory_space<vmem>>, vector<1x8xf32>
      %95 = arith.subf %93, %94 : vector<1x8xf32>
      %cst_44 = arith.constant 0.000000e+00 : f32
      %96 = vector.broadcast %cst_44 : f32 to vector<1x8xf32>
      %97 = arith.maximumf %95, %96 : vector<1x8xf32>
      %c0_45 = arith.constant 0 : index
      %c0_46 = arith.constant 0 : index
      %98 = vector.load %arg3[%c0_45, %c0_46] : memref<1x1xf32, #tpu.memory_space<vmem>>, vector<1x1xf32>
      %99 = vector.shape_cast %97 : vector<1x8xf32> to vector<1x1x8xf32>
      %cst_47 = arith.constant dense<0.000000e+00> : vector<1xf32>
      %100 = vector.multi_reduction <add>, %99, %cst_47 [1, 2] : vector<1x1x8xf32> to vector<1xf32>
      %101 = vector.shape_cast %100 : vector<1xf32> to vector<1x1x1xf32>
      %102 = vector.extract %101[0, 0, 0] : f32 from vector<1x1x1xf32>
      %103 = vector.broadcast %102 : f32 to vector<1x1xf32>
      %104 = arith.addf %98, %103 : vector<1x1xf32>
      %c0_48 = arith.constant 0 : index
      %c0_49 = arith.constant 0 : index
      %105 = vector.load %arg3[%c0_48, %c0_49] : memref<1x1xf32, #tpu.memory_space<vmem>>, vector<1x1xf32>
      tpu.vector_store %arg3[%c0_48, %c0_49], %104 {strides = array<i32>} : memref<1x1xf32, #tpu.memory_space<vmem>>, vector<1x1xf32>,
    } else {
    }
    return
  }
  func.func @transform_0(%arg0: i32) -> (i32, i32) {
    %c0_i32 = arith.constant 0 : i32
    %c0_i32_0 = arith.constant 0 : i32
    return %arg0, %c0_i32 : i32, i32
  }
  func.func @transform_1(%arg0: i32) -> (i32, i32) {
    %c0_i32 = arith.constant 0 : i32
    %c0_i32_0 = arith.constant 0 : i32
    %c0_i32_1 = arith.constant 0 : i32
    return %c0_i32, %c0_i32_0 : i32, i32
  }
  func.func @transform_2(%arg0: i32) -> (i32, i32) {
    %c0_i32 = arith.constant 0 : i32
    %c0_i32_0 = arith.constant 0 : i32
    %c0_i32_1 = arith.constant 0 : i32
    return %c0_i32, %c0_i32_0 : i32, i32
  }
  func.func @transform_3(%arg0: i32) -> (i32, i32) {
    %c0_i32 = arith.constant 0 : i32
    %c0_i32_0 = arith.constant 0 : i32
    return %c0_i32, %arg0 : i32, i32
  }
}

</mosaic_0001>

<llo_original>
// kernel: tpu_custom_call.1
$region0: #{tpu_custom_call.1}
  #allocation0 [shape = 'u32[]', space=smem, size = 0x4, offset = 0x4, fixed_abs, tag = 'smem constant byte address 0x4 - core index']
  #allocation1 [shape = 'u32[144,128]{1,0:T(1,128)}', space=vmem, size = 0x12000, scoped, tag = 'internal scratch']
  #allocation2 [shape = 'f32[1,8]{1,0:T(1,128)}', space=vmem, size = 0x200, scoped, tag = 'scratch operand']
  #allocation3 [shape = 'f32[1,8]{1,0:T(1,128)}', space=vmem, size = 0x200, scoped, tag = 'scratch operand']
  %s0 = inlined_call_operand.hbm [shape: f32[8,32], index: 0, kind: input, shape index: {}]
  %s1 = inlined_call_operand.hbm [shape: f32[8,32], index: 1, kind: input, shape index: {}]
  %s2 = inlined_call_operand.hbm [shape: f32[1,1], index: 2, kind: output, shape index: {0}]
  %s3 = inlined_call_operand.hbm [shape: s32[2,8], index: 3, kind: output, shape index: {1}]
  %4 = xla_tuple %s2, %s3
  %s5 = sld [smem:[#allocation0]]
  $region42: #{tpu_custom_call.1} parent=0
    _
  %s7 = ssub.s32 1, %s5
  %s8 = scalar_select 0, %s7, %s5
  $region1: #{tpu_custom_call.1} parent=0
    #allocation4 [shape = 'u8[4096]{0}', space=vmem, size = 0x1000, scoped, tag = 'input window, operand 0, single buffered']
    #allocation5 [shape = 's32[1]{0}', space=sflag, size = 0x4, scoped, tag = 'scoped memory for tpu_custom_call.1']
    #allocation6 [shape = 's32[1]{0}', space=sflag, size = 0x4, scoped, tag = 'scoped memory for tpu_custom_call.1']
    #allocation7 [shape = 'u8[4096]{0}', space=vmem, size = 0x1000, scoped, tag = 'input window, operand 1, single buffered']
    #allocation8 [shape = 's32[1]{0}', space=sflag, size = 0x4, scoped, tag = 'scoped memory for tpu_custom_call.1']
    #allocation9 [shape = 'u8[512]{0}', space=vmem, size = 0x400, scoped, tag = 'output window, operand 0, single buffered']
    #allocation10 [shape = 'u8[1024]{0}', space=vmem, size = 0x400, scoped, tag = 'output window, operand 1, single buffered']
    #allocation11 [shape = 's32[1]{0}', space=sflag, size = 0x4, scoped, tag = 'scoped memory for tpu_custom_call.1']
    %9 = vsyncpa [#allocation5], 0
    %10 = vsyncpa [#allocation8], 0
    %11 = vsyncpa [#allocation6], 0
    %12 = vsyncpa [#allocation11], 0
    // Predicated region
    $region2: #{tpu_custom_call.1} parent=1 // pred_check
      _
    $region3: #{tpu_custom_call.1} parent=1 // pred_check_branch
      %14 = sbr.rel (0) target = $region5
    $region4: #{tpu_custom_call.1} parent=1 // pred_region
      %s16 = ssub.s32 128, 128
      %17 = vsyncadd [#allocation5], %s16
      %s19 = sshll.u32 [#allocation4], 4
      %s20 = int_to_ptr.vmem [resolvable:$true] %s19
      %22 = dma.hbm_to_vmem [thread:$0]  %s0, 128, %s20, [#allocation5]
    $region5: #{tpu_custom_call.1} parent=1 // pred_fallthru
      _
    // Predicated region
    $region6: #{tpu_custom_call.1} parent=1 // pred_check
      _
    $region7: #{tpu_custom_call.1} parent=1 // pred_check_branch
      %24 = sbr.rel (0) target = $region9
    $region8: #{tpu_custom_call.1} parent=1 // pred_region
      %s26 = ssub.s32 128, 128
      %27 = vsyncadd [#allocation8], %s26
      %s29 = sshll.u32 [#allocation7], 4
      %s30 = int_to_ptr.vmem [resolvable:$true] %s29
      %32 = dma.hbm_to_vmem [thread:$0]  %s1, 128, %s30, [#allocation8]
    $region9: #{tpu_custom_call.1} parent=1 // pred_fallthru
      _
    // Predicated region
    $region10: #{tpu_custom_call.1} parent=1 // pred_check
      _
    $region11: #{tpu_custom_call.1} parent=1 // pred_check_branch
      %34 = sbr.rel (0) target = $region13
    $region12: #{tpu_custom_call.1} parent=1 // pred_region
      %35 = dma.done [#allocation5], 128
    $region13: #{tpu_custom_call.1} parent=1 // pred_fallthru
      _
    // Predicated region
    $region14: #{tpu_custom_call.1} parent=1 // pred_check
      _
    $region15: #{tpu_custom_call.1} parent=1 // pred_check_branch
      %37 = sbr.rel (0) target = $region17
    $region16: #{tpu_custom_call.1} parent=1 // pred_region
      %38 = dma.done [#allocation8], 128
    $region17: #{tpu_custom_call.1} parent=1 // pred_fallthru
      _
    %p39 = scmp.eq.s32.totalorder 0, 0
    // Predicated region
    $region18: #{tpu_custom_call.1} parent=1 // pred_check
      %p40 = pneg %p39
    $region19: #{tpu_custom_call.1} parent=1 // pred_check_branch
      %42 = sbr.rel (%p40) target = $region21
    $region20: #{tpu_custom_call.1} parent=1 // pred_region
      %vm43 = vcmask 0
      %44 = vst.msk [vmem:[#allocation9] sm:$0x1] %vm43, 0.0
      %vm45 = vcmask 57344
      %46 = vst.msk [vmem:[#allocation2] sm:$0x1] %vm45, -inf
      %47 = vst.msk [vmem:[#allocation3] sm:$0x1] %vm45, 0.0
    $region21: #{tpu_custom_call.1} parent=1 // pred_fallthru
      _
    %v48 = vld [vmem:[#allocation4] sm:$0xff]
    %v49 = vld [vmem:[#allocation7] sm:$0xff]
    %vm50 = vcmask 261120
    %v52 = vsel %vm50, %v48, 0
    %v55 = vsel %vm50, %v49, 0
    %57 = vmatprep.subr.mxu0 0.0
    %58 = vmatpush1.xpose.msra.mxu0 %v55
    %59 = vmatprep.subr.mxu0 0.0
    %60 = vmatpush1.xpose.msra.mxu0 0.0
    %61 = vmatprep.subr.mxu0 0.0
    %62 = vmatpush1.xpose.msra.mxu0 0.0
    %63 = vmatprep.subr.mxu0 0.0
    %64 = vmatpush1.xpose.msra.mxu0 0.0
    %65 = vmatprep.subr.mxu0 0.0
    %66 = vmatpush1.xpose.msra.mxu0 0.0
    %67 = vmatprep.subr.mxu0 0.0
    %68 = vmatpush1.xpose.msra.mxu0 0.0
    %69 = vmatprep.subr.mxu0 0.0
    %70 = vmatpush1.xpose.msra.mxu0 0.0
    %71 = vmatprep.subr.mxu0 0.0
    %72 = vmatpush1.xpose.msra.mxu0 0.0
    %73 = vmatprep.subr.mxu0 0.0
    %74 = vmatpush1.xpose.msra.mxu0 0.0
    %75 = vmatprep.subr.mxu0 0.0
    %76 = vmatpush1.xpose.msra.mxu0 0.0
    %77 = vmatprep.subr.mxu0 0.0
    %78 = vmatpush1.xpose.msra.mxu0 0.0
    %79 = vmatprep.subr.mxu0 0.0
    %80 = vmatpush1.xpose.msra.mxu0 0.0
    %81 = vmatprep.subr.mxu0 0.0
    %82 = vmatpush1.xpose.msra.mxu0 0.0
    %83 = vmatprep.subr.mxu0 0.0
    %84 = vmatpush1.xpose.msra.mxu0 0.0
    %85 = vmatprep.subr.mxu0 0.0
    %86 = vmatpush1.xpose.msra.mxu0 0.0
    %87 = vmatprep.subr.mxu0 0.0
    %88 = vmatpush1.xpose.msra.mxu0 0.0
    %89 = vmatprep.subr.mxu0 0.0
    %90 = vmatpush1.xpose.msra.mxu0 0.0
    %91 = vmatprep.subr.mxu0 0.0
    %92 = vmatpush1.xpose.msra.mxu0 0.0
    %93 = vmatprep.subr.mxu0 0.0
    %94 = vmatpush1.xpose.msra.mxu0 0.0
    %95 = vmatprep.subr.mxu0 0.0
    %96 = vmatpush1.xpose.msra.mxu0 0.0
    %97 = vmatprep.subr.mxu0 0.0
    %98 = vmatpush1.xpose.msra.mxu0 0.0
    %99 = vmatprep.subr.mxu0 0.0
    %100 = vmatpush1.xpose.msra.mxu0 0.0
    %101 = vmatprep.subr.mxu0 0.0
    %102 = vmatpush1.xpose.msra.mxu0 0.0
    %103 = vmatprep.subr.mxu0 0.0
    %104 = vmatpush1.xpose.msra.mxu0 0.0
    %105 = vmatprep.subr.mxu0 0.0
    %106 = vmatpush1.xpose.msra.mxu0 0.0
    %107 = vmatprep.subr.mxu0 0.0
    %108 = vmatpush1.xpose.msra.mxu0 0.0
    %109 = vmatprep.subr.mxu0 0.0
    %110 = vmatpush1.xpose.msra.mxu0 0.0
    %111 = vmatprep.subr.mxu0 0.0
    %112 = vmatpush1.xpose.msra.mxu0 0.0
    %113 = vmatprep.subr.mxu0 0.0
    %114 = vmatpush1.xpose.msra.mxu0 0.0
    %115 = vmatprep.subr.mxu0 0.0
    %116 = vmatpush1.xpose.msra.mxu0 0.0
    %117 = vmatprep.subr.mxu0 0.0
    %118 = vmatpush1.xpose.msra.mxu0 0.0
    %119 = vmatprep.subr.mxu0 0.0
    %120 = vmatpush1.xpose.msra.mxu0 0.0
    %121 = vmatprep.mubr.f32.mxu0 0.0
    %122 = vmatmul.mubr.f32.gmra.mrb[0].mxu0 %v52
    %v123 = vpop.f32.mrb[0].mxu0
    %v124 = vadd.f32 0.0, %v123
    %v125 = vpop.f32.mrb[0].mxu0
    %126 = vdwg.mxu0
    %s127 = smul.u32 0, 8
    %v128 = vlaneseq
    %v129 = vshrl.u32 %v128, 7
    %v130 = vstv %s127
    %v131 = vadd.s32 %v130, %v129
    %v132 = vlaneseq
    %v133 = vand.u32 %v132, 127
    %vm134 = vcmp.eq.s32.totalorder %v133, %v131
    %v135 = vsel %vm134, %v124, 0.0
    %vm136 = vcmask 64512
    %v137 = vsel %vm136, %v135, 0.0
    %138 = vadd.xlane.f32.xlu0 %v137
    %v139 = vpop.xlane.xlu0 %138
    %v140 = vld [vmem:[#allocation3] sm:$0x1]
    %v141 = vrot.slane %v137, 4
    %v142 = vadd.f32 %v137, %v141
    %v143 = vrot.slane %v142, 2
    %v144 = vadd.f32 %v142, %v143
    %v145 = vrot.slane %v144, 1
    %v146 = vadd.f32 %v144, %v145
    %v147 = vadd.f32 %v140, %v146
    %vm148 = vcmask 57344
    %149 = vst.msk [vmem:[#allocation3] sm:$0x1] %vm148, %v147
    %v150 = vsel %vm134, -inf, %v124
    %v151 = vsel %vm136, %v150, -inf
    %152 = vmax.xlane.f32.xlu0 %v151
    %v153 = vpop.xlane.xlu0 %152
    %v154 = vadd.f32 %v153, 0.0
    %v155 = vsub.f32 %v154, %v139
    %v156 = vmax.f32 %v155, 0.0
    %v157 = vld [vmem:[#allocation9] sm:$0x1]
    %vm158 = vcmask 7168
    %v159 = vsel %vm158, %v156, 0.0
    %160 = vadd.xlane.f32.xlu0 %v159
    %v161 = vpop.xlane.xlu0 %160
    %v162 = vrot.slane %v161, 4
    %v163 = vadd.f32 %v161, %v162
    %v164 = vrot.slane %v163, 2
    %v165 = vadd.f32 %v163, %v164
    %v166 = vrot.slane %v165, 1
    %v167 = vadd.f32 %v165, %v166
    %s168 = vtos %v167
    %v169 = vstv %s168
    %v170 = vadd.f32 %v157, %v169
    %vm171 = vcmask 0
    %172 = vst.msk [vmem:[#allocation9] sm:$0x1] %vm171, %v170
    %v173 = vld [vmem:[#allocation2] sm:$0x1]
    %v174 = vrot.slane %v151, 4
    %v175 = vmax.f32 %v151, %v174
    %v176 = vrot.slane %v175, 2
    %v177 = vmax.f32 %v175, %v176
    %v178 = vrot.slane %v177, 1
    %v179 = vmax.f32 %v177, %v178
    %v180 = vmax.f32 %v173, %v179
    %181 = vst.msk [vmem:[#allocation2] sm:$0x1] %vm148, %v180
    %vm182 = vcmp.gt.f32.partialorder %v124, %v139
    %v183 = vsel %vm182, 1, 0
    %v184 = vcvt.s32.f32 %v183
    %vm185 = vcmp.eq.f32.partialorder %v124, %v139
    %vm186 = vcmp.gt.s32.totalorder %v133, %v131
    %vm187 = vmand %vm185, %vm186
    %v188 = vsel %vm187, 1, 0
    %v189 = vcvt.s32.f32 %v188
    %v190 = vadd.f32 %v184, %v189
    %v191 = vsel %vm136, %v190, 0.0
    %192 = vadd.xlane.f32.xlu0 %v191
    %v193 = vpop.xlane.xlu0 %192
    %v194 = vcvt.s32.f32 %v133
    %v195 = vsel %vm136, %v124, -inf
    %196 = vmax.xlane.f32.xlu0 %v195
    %v197 = vpop.xlane.xlu0 %196
    %vm198 = vcmp.eq.f32.partialorder %v124, %v197
    %v199 = vsel %vm198, %v194, -1.0
    %v200 = vsel %vm136, %v199, -inf
    %201 = vmax.xlane.f32.xlu0 %v200
    %v202 = vpop.xlane.xlu0 %201
    %vm203 = vcmp.eq.s32.totalorder %v129, %v133
    %v204 = vsel %vm203, %v193, 0.0
    %v205 = vsel %vm136, %v204, 0.0
    %v206 = vrot.slane %v205, 4
    %v207 = vadd.f32 %v205, %v206
    %v208 = vrot.slane %v207, 2
    %v209 = vadd.f32 %v207, %v208
    %v210 = vrot.slane %v209, 1
    %v211 = vadd.f32 %v209, %v210
    %v212 = vsel %vm203, %v202, 0.0
    %v213 = vsel %vm136, %v212, 0.0
    %v214 = vrot.slane %v213, 4
    %v215 = vadd.f32 %v213, %v214
    %v216 = vrot.slane %v215, 2
    %v217 = vadd.f32 %v215, %v216
    %v218 = vrot.slane %v217, 1
    %v219 = vadd.f32 %v217, %v218
    %v220 = vcvt.f32.s32.to.zero.pseudo %v211
    %221 = vst.msk [vmem:[#allocation10] sm:$0x1] %vm148, %v220
    %v222 = vcvt.f32.s32.to.zero.pseudo %v219
    %223 = vst.msk [vmem:[#allocation10 + $0x1] sm:$0x1] %vm148, %v222
    // Predicated region
    $region22: #{tpu_custom_call.1} parent=1 // pred_check
      %p224 = pneg %p39
    $region23: #{tpu_custom_call.1} parent=1 // pred_check_branch
      %226 = sbr.rel (%p224) target = $region25
    $region24: #{tpu_custom_call.1} parent=1 // pred_region
      %v227 = vld [vmem:[#allocation2] sm:$0x1]
      %v228 = vadd.f32 %v227, 0.0
      %v229 = vld [vmem:[#allocation3] sm:$0x1]
      %v230 = vsub.f32 %v228, %v229
      %v231 = vmax.f32 %v230, 0.0
      %v232 = vld [vmem:[#allocation9] sm:$0x1]
      %v233 = vsel %vm148, %v231, 0.0
      %234 = vadd.xlane.f32.xlu0 %v233
      %v235 = vpop.xlane.xlu0 %234
      %v236 = vrot.slane %v235, 4
      %v237 = vadd.f32 %v235, %v236
      %v238 = vrot.slane %v237, 2
      %v239 = vadd.f32 %v237, %v238
      %v240 = vrot.slane %v239, 1
      %v241 = vadd.f32 %v239, %v240
      %s242 = vtos %v241
      %v243 = vstv %s242
      %v244 = vadd.f32 %v232, %v243
      %245 = vst.msk [vmem:[#allocation9] sm:$0x1] %vm171, %v244
    $region25: #{tpu_custom_call.1} parent=1 // pred_fallthru
      _
    // Predicated region
    $region26: #{tpu_custom_call.1} parent=1 // pred_check
      _
    $region27: #{tpu_custom_call.1} parent=1 // pred_check_branch
      %247 = sbr.rel (0) target = $region29
    $region28: #{tpu_custom_call.1} parent=1 // pred_region
      %s249 = ssub.s32 16, 16
      %250 = vsyncadd [#allocation6], %s249
      %s252 = sshll.u32 [#allocation9], 4
      %s253 = int_to_ptr.vmem [resolvable:$true] %s252
      %255 = dma.vmem_to_hbm [thread:$0]  %s253, 16, %s2, [#allocation6]
    $region29: #{tpu_custom_call.1} parent=1 // pred_fallthru
      _
    // Predicated region
    $region30: #{tpu_custom_call.1} parent=1 // pred_check
      _
    $region31: #{tpu_custom_call.1} parent=1 // pred_check_branch
      %257 = sbr.rel (0) target = $region33
    $region32: #{tpu_custom_call.1} parent=1 // pred_region
      %s259 = ssub.s32 32, 32
      %260 = vsyncadd [#allocation11], %s259
      %s262 = sshll.u32 [#allocation10], 4
      %s263 = int_to_ptr.vmem [resolvable:$true] %s262
      %265 = dma.vmem_to_hbm [thread:$0]  %s263, 32, %s3, [#allocation11]
    $region33: #{tpu_custom_call.1} parent=1 // pred_fallthru
      _
    // Predicated region
    $region34: #{tpu_custom_call.1} parent=1 // pred_check
      _
    $region35: #{tpu_custom_call.1} parent=1 // pred_check_branch
      %267 = sbr.rel (0) target = $region37
    $region36: #{tpu_custom_call.1} parent=1 // pred_region
      %268 = dma.done [#allocation6], 16
    $region37: #{tpu_custom_call.1} parent=1 // pred_fallthru
      _
    // Predicated region
    $region38: #{tpu_custom_call.1} parent=1 // pred_check
      _
    $region39: #{tpu_custom_call.1} parent=1 // pred_check_branch
      %270 = sbr.rel (0) target = $region41
    $region40: #{tpu_custom_call.1} parent=1 // pred_region
      %271 = dma.done [#allocation11], 32
    $region41: #{tpu_custom_call.1} parent=1 // pred_fallthru
      _
    %272 = vsyncpa [#allocation5], 1
    %273 = vsyncpa [#allocation8], 1
    %274 = vsyncpa [#allocation6], 1
    %275 = vsyncpa [#allocation11], 1

</llo_original>
